<compile_context>
chip_gen: v5e
topology: v5e:2x2
jax: 0.10.0
libtpu: 0.0.40
codegen_flags: <defaults>
</compile_context>

<pallas_src>
import functools
import math

import jax
import jax.numpy as jnp
from jax import lax
from jax.experimental import pallas as pl
from jax.experimental.pallas import tpu as pltpu


# ---------------------------------------------------------------------------
# Tuning knobs
# ---------------------------------------------------------------------------
_TILE_BYTES = 4 * 1024 * 1024     # ~4 MiB per input tile (amortizes step overhead)
_TR_MAX = 2048                    # max rows per tile
_SPLIT_BYTES = 1 * 1024 * 1024    # force >=2 row tiles above this (v7x: 2 TCs)
_VMEM_LIMIT = 48 * 1024 * 1024    # under v7x's 64 MiB physical VMEM

# Activations that need transcendentals -> compute in f32 (unless flag below).
_TRANSCENDENTAL = frozenset({"celu", "elu", "gelu", "selu", "silu",
                             "sigmoid", "tanh"})
# Set True on v6e/v7x to keep bf16 through the EUP (2x transcendental
# throughput; ~1e-3 precision tradeoff).  Kept off by default for accuracy.
_BF16_EUP_NATIVE = False


def _compiler_params(n_axes):
    return pltpu.CompilerParams(
        dimension_semantics=("parallel",) * n_axes,
        vmem_limit_bytes=_VMEM_LIMIT,
    )


def _cdiv(a, b):
    return -(-a // b)


def _prod(shape):
    return int(math.prod(shape)) if shape else 1


def _sublane_multiple(dtype):
    # f32 -> 8 rows per vreg tile, bf16 -> 16, int8/fp8 -> 32.
    return max(8, 32 // jnp.dtype(dtype).itemsize)


def _pick_row_tile(rows, cols, itemsize, sub):
    """Row tile: multiple of the packed-sublane count, ~_TILE_BYTES per tile."""
    tr = _TILE_BYTES // max(1, cols * itemsize)
    tr = max(sub, (tr // sub) * sub)
    tr = min(tr, _TR_MAX)
    total = rows * cols * itemsize
    if total >= _SPLIT_BYTES and rows >= 2 * sub:
        # Guarantee >=2 row blocks so the "parallel" grid axis can shard
        # across both TensorCores on v7x.
        half = max(sub, (((rows + 1) // 2) // sub) * sub)
        tr = min(tr, half)
    return rows if tr >= rows else tr


def _pick_col_tile(post, d, itemsize):
    """Lane tile for (1, d, tc) blocks, sized from _TILE_BYTES."""
    if post <= 128:
        return post
    tc = _TILE_BYTES // max(1, d * itemsize)
    tc = max(128, (tc // 128) * 128)
    return post if tc >= post else tc


def _plan_2d(x):
    """View x as a lane-dense (rows, cols) slab.

    Fast path (numel % 128 == 0): pure free reshape, no pad, no slice-back.
    Fallback (rare, small odd sizes): pad the flat vector once.
    Returns (x2d, rows, cols, tr, padded, numel).
    """
    t = int(x.size)
    flat = x.reshape(-1)
    itemsize = x.dtype.itemsize
    sub = _sublane_multiple(x.dtype)
    padded = False
    if t % 128 == 0:
        if t % 512 == 0:
            cols = 512
        elif t % 256 == 0:
            cols = 256
        else:
            cols = 128
    else:
        # TODO(synk): rare fallback; costs one extra HBM pass for pad + slice.
        cols = 128
        pad = (-t) % 128
        flat = jnp.pad(flat, (0, pad))
        padded = True
    rows = flat.shape[0] // cols
    x2d = flat.reshape(rows, cols)
    tr = _pick_row_tile(rows, cols, itemsize, sub)
    return x2d, rows, cols, tr, padded, t


# ---------------------------------------------------------------------------
# Elementwise activation kernels
# ---------------------------------------------------------------------------
def _elementwise_fn(act, kwargs):
    act = act.lower()

    def fn(x):
        if act == "relu":
            return jnp.maximum(x, 0.0)
        if act == "relu6":
            return jnp.clip(x, 0.0, 6.0)
        if act == "leakyrelu":
            slope = float(kwargs.get("negative_slope", 0.01))
            return jnp.where(x >= 0.0, x, slope * x)
        if act == "celu":
            alpha = float(kwargs.get("alpha", 1.0))
            return jnp.maximum(x, 0.0) + jnp.minimum(
                0.0, alpha * jnp.expm1(jnp.minimum(x, 0.0) / alpha))
        if act == "elu":
            alpha = float(kwargs.get("alpha", 1.0))
            return jnp.where(x > 0.0, x, alpha * jnp.expm1(jnp.minimum(x, 0.0)))
        if act == "hardswish":
            return x * jnp.clip(x + 3.0, 0.0, 6.0) / 6.0
        if act == "hardtanh":
            lo = float(kwargs.get("min_val", -1.0))
            hi = float(kwargs.get("max_val", 1.0))
            return jnp.clip(x, lo, hi)
        if act == "gelu":
            if kwargs.get("approximate", "none") == "tanh":
                c = math.sqrt(2.0 / math.pi)
                return 0.5 * x * (1.0 + jnp.tanh(c * (x + 0.044715 * x * x * x)))
            return 0.5 * x * (1.0 + lax.erf(x * (1.0 / math.sqrt(2.0))))
        if act == "selu":
            alpha = 1.6732632423543772
            scale = 1.0507009873554805
            return scale * jnp.where(x > 0.0, x,
                                     alpha * jnp.expm1(jnp.minimum(x, 0.0)))
        if act == "silu":
            return x * jax.nn.sigmoid(x)
        if act == "sigmoid":
            return jax.nn.sigmoid(x)
        if act == "tanh":
            return jnp.tanh(x)
        raise NotImplementedError(f"Unsupport activation type: {act}")

    return fn


def _make_elementwise_kernel(act, kwargs, upcast):
    fn = _elementwise_fn(act, kwargs)

    def kernel(x_ref, o_ref):
        x = x_ref[...]
        if upcast:
            x = x.astype(jnp.float32)
        o_ref[...] = fn(x).astype(o_ref.dtype)

    return kernel


def _prelu_kernel(w_ref, x_ref, o_ref):
    # nn.PReLU(num_parameters=1): single learnable scalar (init 0.25).
    x = x_ref[...]
    w = w_ref[0].astype(x.dtype)
    o_ref[...] = jnp.where(x >= 0, x, w * x).astype(o_ref.dtype)


def _glu2d_kernel(x_ref, o_ref):
    # GLU over the last dim; halves sliced in-kernel (no wrapper split/copy).
    x = x_ref[...]
    h = x.shape[-1] // 2
    a = x[:, :h].astype(jnp.float32)
    b = x[:, h:].astype(jnp.float32)
    o_ref[...] = (a * jax.nn.sigmoid(b)).astype(o_ref.dtype)


def _glu3d_kernel(x_ref, o_ref):
    # GLU over an interior dim; x block is (1, d, tc), halves along axis 1.
    x = x_ref[...]
    h = x.shape[1] // 2
    a = x[:, :h, :].astype(jnp.float32)
    b = x[:, h:, :].astype(jnp.float32)
    o_ref[...] = (a * jax.nn.sigmoid(b)).astype(o_ref.dtype)


def _softmax_lane_kernel(x_ref, o_ref):
    # Reduction over the last (lane) axis; full reduction dim in-block.
    x = x_ref[...].astype(jnp.float32)
    m = jnp.max(x, axis=-1, keepdims=True)
    e = jnp.exp(x - m)
    s = jnp.sum(e, axis=-1, keepdims=True)
    o_ref[...] = (e / s).astype(o_ref.dtype)      # exact divide (perf-neutral)


def _softmax_mid_kernel(x_ref, o_ref):
    # Reduction over axis 1 (sublanes) of a (1, d, tc) block; lanes stay dense.
    x = x_ref[...].astype(jnp.float32)
    m = jnp.max(x, axis=1, keepdims=True)
    e = jnp.exp(x - m)
    s = jnp.sum(e, axis=1, keepdims=True)
    o_ref[...] = (e / s).astype(o_ref.dtype)


# ---------------------------------------------------------------------------
# Cached pallas_call builders (avoid per-call retrace / recompile)
# ---------------------------------------------------------------------------
@functools.lru_cache(maxsize=None)
def _build_elementwise_call(act, kwargs_items, rows, cols, tr, dtype_name):
    dtype = jnp.dtype(dtype_name)
    upcast = (act in _TRANSCENDENTAL and dtype != jnp.float32
              and not (_BF16_EUP_NATIVE and dtype == jnp.bfloat16))
    kernel = _make_elementwise_kernel(act, dict(kwargs_items), upcast)
    return pl.pallas_call(
        kernel,
        out_shape=jax.ShapeDtypeStruct((rows, cols), dtype),
        grid=(pl.cdiv(rows, tr),),
        in_specs=[pl.BlockSpec((tr, cols), lambda i: (i, 0))],
        out_specs=pl.BlockSpec((tr, cols), lambda i: (i, 0)),
        compiler_params=_compiler_params(1),
    )


@functools.lru_cache(maxsize=None)
def _build_prelu_call(rows, cols, tr, dtype_name):
    dtype = jnp.dtype(dtype_name)
    return pl.pallas_call(
        _prelu_kernel,
        out_shape=jax.ShapeDtypeStruct((rows, cols), dtype),
        grid=(pl.cdiv(rows, tr),),
        in_specs=[
            pl.BlockSpec(memory_space=pltpu.MemorySpace.SMEM),   # scalar weight
            pl.BlockSpec((tr, cols), lambda i: (i, 0)),
        ],
        out_specs=pl.BlockSpec((tr, cols), lambda i: (i, 0)),
        compiler_params=_compiler_params(1),
    )


@functools.lru_cache(maxsize=None)
def _build_glu2d_call(rows, d, tr, dtype_name):
    dtype = jnp.dtype(dtype_name)
    half = d // 2
    return pl.pallas_call(
        _glu2d_kernel,
        out_shape=jax.ShapeDtypeStruct((rows, half), dtype),
        grid=(pl.cdiv(rows, tr),),
        in_specs=[pl.BlockSpec((tr, d), lambda i: (i, 0))],
        out_specs=pl.BlockSpec((tr, half), lambda i: (i, 0)),
        compiler_params=_compiler_params(1),
    )


@functools.lru_cache(maxsize=None)
def _build_glu3d_call(pre, d, post, tc, dtype_name):
    dtype = jnp.dtype(dtype_name)
    half = d // 2
    return pl.pallas_call(
        _glu3d_kernel,
        out_shape=jax.ShapeDtypeStruct((pre, half, post), dtype),
        grid=(pre, pl.cdiv(post, tc)),
        in_specs=[pl.BlockSpec((1, d, tc), lambda i, j: (i, 0, j))],
        out_specs=pl.BlockSpec((1, half, tc), lambda i, j: (i, 0, j)),
        compiler_params=_compiler_params(2),
    )


@functools.lru_cache(maxsize=None)
def _build_softmax_lane_call(rows, d, tr, dtype_name):
    dtype = jnp.dtype(dtype_name)
    return pl.pallas_call(
        _softmax_lane_kernel,
        out_shape=jax.ShapeDtypeStruct((rows, d), dtype),
        grid=(pl.cdiv(rows, tr),),
        in_specs=[pl.BlockSpec((tr, d), lambda i: (i, 0))],
        out_specs=pl.BlockSpec((tr, d), lambda i: (i, 0)),
        compiler_params=_compiler_params(1),
    )


@functools.lru_cache(maxsize=None)
def _build_softmax_mid_call(pre, d, post, tc, dtype_name):
    dtype = jnp.dtype(dtype_name)
    return pl.pallas_call(
        _softmax_mid_kernel,
        out_shape=jax.ShapeDtypeStruct((pre, d, post), dtype),
        grid=(pre, pl.cdiv(post, tc)),
        in_specs=[pl.BlockSpec((1, d, tc), lambda i, j: (i, 0, j))],
        out_specs=pl.BlockSpec((1, d, tc), lambda i, j: (i, 0, j)),
        compiler_params=_compiler_params(2),
    )


# ---------------------------------------------------------------------------
# Public wrapper mirroring Activation.forward
# ---------------------------------------------------------------------------
class Activation:
    """JAX/Pallas port of models.modules.Activation."""

    _HUB = {
        "relu", "relu6", "leakyrelu", "prelu", "celu", "elu", "hardswish",
        "hardtanh", "gelu", "glu", "selu", "silu", "sigmoid", "softmax",
        "tanh", "none",
    }

    def __init__(self, act_type, **kwargs):
        act_type = act_type.lower()
        if act_type not in self._HUB:
            raise NotImplementedError(f"Unsupport activation type: {act_type}")
        self.act_type = act_type
        self.kwargs = kwargs
        if act_type == "prelu":
            # TODO(synk): per-channel PReLU (num_parameters=C) not wired up.
            if int(kwargs.get("num_parameters", 1)) != 1:
                raise NotImplementedError("PReLU num_parameters != 1 unsupported")
            init = float(kwargs.get("init", 0.25))
            self.prelu_weight = jnp.full((1,), init, dtype=jnp.float32)

    # ---- softmax -----------------------------------------------------------
    def _softmax(self, x):
        dim = self.kwargs.get("dim", None)
        if dim is None:
            # TODO(synk): mirrors torch's legacy Softmax(dim=None) inference.
            dim = 0 if x.ndim in (0, 1, 3) else 1
        dim = dim % x.ndim
        d = x.shape[dim]
        pre = _prod(x.shape[:dim])
        post = _prod(x.shape[dim + 1:])
        if dim == x.ndim - 1:
            # Reduce over lanes; free reshape to (pre, d).
            x2 = x.reshape(pre, d)
            tr = _pick_row_tile(pre, d, x.dtype.itemsize,
                                _sublane_multiple(x.dtype))
            y2 = _build_softmax_lane_call(pre, d, tr, x.dtype.name)(x2)
            return y2.reshape(x.shape)
        # Interior dim: free reshape to (pre, d, post); reduce over sublanes,
        # lanes stay dense.  No moveaxis/transpose copy.
        x3 = x.reshape(pre, d, post)
        tc = _pick_col_tile(post, d, x.dtype.itemsize)
        y3 = _build_softmax_mid_call(pre, d, post, tc, x.dtype.name)(x3)
        return y3.reshape(x.shape)

    # ---- glu ---------------------------------------------------------------
    def _glu(self, x):
        dim = self.kwargs.get("dim", -1)
        dim = dim % x.ndim
        d = x.shape[dim]
        if d % 2 != 0:
            raise ValueError("GLU dim size must be even")
        half = d // 2
        out_shape = x.shape[:dim] + (half,) + x.shape[dim + 1:]
        pre = _prod(x.shape[:dim])
        post = _prod(x.shape[dim + 1:])
        if dim == x.ndim - 1:
            x2 = x.reshape(pre, d)
            tr = _pick_row_tile(pre, d, x.dtype.itemsize,
                                _sublane_multiple(x.dtype))
            y2 = _build_glu2d_call(pre, d, tr, x.dtype.name)(x2)
            return y2.reshape(out_shape)
        x3 = x.reshape(pre, d, post)
        tc = _pick_col_tile(post, d, x.dtype.itemsize)
        y3 = _build_glu3d_call(pre, d, post, tc, x.dtype.name)(x3)
        return y3.reshape(out_shape)

    # ---- elementwise -------------------------------------------------------
    def _elementwise(self, x):
        x2d, rows, cols, tr, padded, t = _plan_2d(x)
        if self.act_type == "prelu":
            y2d = _build_prelu_call(rows, cols, tr, x.dtype.name)(
                self.prelu_weight, x2d)
        else:
            kwargs_items = tuple(sorted(self.kwargs.items()))
            y2d = _build_elementwise_call(self.act_type, kwargs_items,
                                          rows, cols, tr, x.dtype.name)(x2d)
        if padded:
            return y2d.reshape(-1)[:t].reshape(x.shape)
        return y2d.reshape(x.shape)

    def __call__(self, x):
        act = self.act_type
        if act == "none":
            return x            # identity: no kernel launch, no HBM traffic
        if act == "softmax":
            return self._softmax(x)
        if act == "glu":
            return self._glu(x)
        return self._elementwise(x)


# ---------------------------------------------------------------------------
# Demo / self-check
# ---------------------------------------------------------------------------
if __name__ == "__main__":
    key = jax.random.PRNGKey(0)
    x = jax.random.normal(key, (2, 4, 16, 16), dtype=jnp.float32)  # NCHW

    checks = []

    def ok(name, got, want, atol):
        good = bool(jnp.allclose(got, want, atol=atol, rtol=1e-5))
        if not good:
            print(f"MISMATCH: {name}")
        checks.append(good)

    y = jax.block_until_ready(Activation("relu")(x))
    ok("relu", y, jnp.maximum(x, 0.0), 1e-6)

    y = jax.block_until_ready(Activation("relu6")(x))
    ok("relu6", y, jnp.clip(x, 0.0, 6.0), 1e-6)

    y = jax.block_until_ready(Activation("leakyrelu")(x))
    ok("leakyrelu", y, jnp.where(x >= 0, x, 0.01 * x), 1e-6)

    y = jax.block_until_ready(Activation("hardswish")(x))
    ok("hardswish", y, x * jnp.clip(x + 3.0, 0.0, 6.0) / 6.0, 1e-6)

    y = jax.block_until_ready(Activation("hardtanh")(x))
    ok("hardtanh", y, jnp.clip(x, -1.0, 1.0), 1e-6)

    y = jax.block_until_ready(Activation("gelu")(x))
    ok("gelu", y, jax.nn.gelu(x, approximate=False), 1e-5)

    y = jax.block_until_ready(Activation("silu")(x))
    ok("silu", y, x * jax.nn.sigmoid(x), 1e-5)

    y = jax.block_until_ready(Activation("sigmoid")(x))
    ok("sigmoid", y, jax.nn.sigmoid(x), 1e-5)

    y = jax.block_until_ready(Activation("tanh")(x))
    ok("tanh", y, jnp.tanh(x), 1e-5)

    y = jax.block_until_ready(Activation("prelu")(x))
    ok("prelu", y, jnp.where(x >= 0, x, 0.25 * x), 1e-6)

    # softmax over the small channel dim (dim=1) -> sublane-reduction path
    y = jax.block_until_ready(Activation("softmax", dim=1)(x))
    ok("softmax_dim1", y, jax.nn.softmax(x, axis=1), 1e-5)

    # softmax over a wide last dim -> lane-reduction path
    xw = jax.random.normal(jax.random.PRNGKey(1), (8, 256), dtype=jnp.float32)
    y = jax.block_until_ready(Activation("softmax", dim=-1)(xw))
    ok("softmax_lane", y, jax.nn.softmax(xw, axis=-1), 1e-5)

    # glu over the channel dim (dim=1): (2,4,16,16) -> (2,2,16,16)
    y = jax.block_until_ready(Activation("glu", dim=1)(x))
    a, b = jnp.split(x, 2, axis=1)
    checks.append(y.shape == (2, 2, 16, 16))
    ok("glu_dim1", y, a * jax.nn.sigmoid(b), 1e-5)

    # glu over the last dim (torch default): (8,32) -> (8,16)
    x2 = jax.random.normal(jax.random.PRNGKey(2), (8, 32), dtype=jnp.float32)
    y = jax.block_until_ready(Activation("glu")(x2))
    a2, b2 = jnp.split(x2, 2, axis=-1)
    checks.append(y.shape == (8, 16))
    ok("glu_last", y, a2 * jax.nn.sigmoid(b2), 1e-5)

    # bf16-native clamp path
    xb = x.astype(jnp.bfloat16)
    y = jax.block_until_ready(Activation("relu")(xb))
    checks.append(y.dtype == jnp.bfloat16)
    ok("relu_bf16", y.astype(jnp.float32),
       jnp.maximum(xb, 0).astype(jnp.float32), 1e-6)

    # identity short-circuit (no kernel launch)
    y = Activation("none")(x)
    checks.append(y is x)

    if all(bool(c) for c in checks):
        print("KERNEL_OK")
    else:
        raise SystemExit("activation kernel mismatch")
</pallas_src>

<mosaic_0001>
module attributes {stable_mosaic.version = 11 : i64} {
  func.func @kernel(%arg0: i32, %arg1: memref<4x512xf32, #tpu.memory_space<vmem>>, %arg2: memref<4x512xf32, #tpu.memory_space<vmem>>) attributes {dimension_semantics = [#tpu.dimension_semantics<parallel>], iteration_bounds = array<i64: 1>, scalar_prefetch = 0 : i64, scratch_operands = 0 : i64, tpu.core_type = #tpu.core_type<tc>, window_params = [{transform_indices = @transform_0, window_bounds = array<i64: 4, 512>}, {transform_indices = @transform_1, window_bounds = array<i64: 4, 512>}]} {
    %c0 = arith.constant 0 : index
    %c0_0 = arith.constant 0 : index
    %0 = vector.load %arg1[%c0, %c0_0] : memref<4x512xf32, #tpu.memory_space<vmem>>, vector<4x512xf32>
    %cst = arith.constant 0.000000e+00 : f32
    %1 = vector.broadcast %cst : f32 to vector<4x512xf32>
    %2 = arith.maximumf %0, %1 : vector<4x512xf32>
    %c0_1 = arith.constant 0 : index
    %c0_2 = arith.constant 0 : index
    %3 = vector.load %arg2[%c0_1, %c0_2] : memref<4x512xf32, #tpu.memory_space<vmem>>, vector<4x512xf32>
    tpu.vector_store %arg2[%c0_1, %c0_2], %2 {strides = array<i32>} : memref<4x512xf32, #tpu.memory_space<vmem>>, vector<4x512xf32>,
    return
  }
  func.func @transform_0(%arg0: i32) -> (i32, i32) {
    %c0_i32 = arith.constant 0 : i32
    %c0_i32_0 = arith.constant 0 : i32
    return %arg0, %c0_i32 : i32, i32
  }
  func.func @transform_1(%arg0: i32) -> (i32, i32) {
    %c0_i32 = arith.constant 0 : i32
    %c0_i32_0 = arith.constant 0 : i32
    return %arg0, %c0_i32 : i32, i32
  }
}

</mosaic_0001>

<llo_original>
// kernel: tpu_custom_call.1
$region0: #{tpu_custom_call.1}
  #allocation0 [shape = 'u32[]', space=smem, size = 0x4, offset = 0x4, fixed_abs, tag = 'smem constant byte address 0x4 - core index']
  #allocation1 [shape = 'u32[72,128]{1,0:T(1,128)}', space=vmem, size = 0x9000, scoped, tag = 'internal scratch']
  %s0 = inlined_call_operand.hbm [shape: f32[4,512], index: 0, kind: input, shape index: {}]
  %s1 = inlined_call_operand.hbm [shape: f32[4,512], index: 1, kind: output, shape index: {}]
  %s2 = sld [smem:[#allocation0]]
  $region18: #{tpu_custom_call.1} parent=0
    _
  %s4 = ssub.s32 1, %s2
  %s5 = scalar_select 0, %s4, %s2
  $region1: #{tpu_custom_call.1} parent=0
    #allocation2 [shape = 'u8[8192]{0}', space=vmem, size = 0x2000, scoped, tag = 'input window, operand 0, single buffered']
    #allocation3 [shape = 's32[1]{0}', space=sflag, size = 0x4, scoped, tag = 'scoped memory for tpu_custom_call.1']
    #allocation4 [shape = 's32[1]{0}', space=sflag, size = 0x4, scoped, tag = 'scoped memory for tpu_custom_call.1']
    #allocation5 [shape = 'u8[8192]{0}', space=vmem, size = 0x2000, scoped, tag = 'output window, operand 0, single buffered']
    %6 = vsyncpa [#allocation3], 0
    %7 = vsyncpa [#allocation4], 0
    // Predicated region
    $region2: #{tpu_custom_call.1} parent=1 // pred_check
      _
    $region3: #{tpu_custom_call.1} parent=1 // pred_check_branch
      %9 = sbr.rel (0) target = $region5
    $region4: #{tpu_custom_call.1} parent=1 // pred_region
      %11 = vsyncadd [#allocation3], 0
      %s13 = sshll.u32 %s0, 4
      %s14 = int_to_ptr.hbm [resolvable:$true] %s13
      %s15 = sshll.u32 [#allocation2], 4
      %s16 = int_to_ptr.vmem [resolvable:$true] %s15
      %18 = dma.hbm_to_vmem [thread:$0]  %s14, 256, %s16, [#allocation3]
    $region5: #{tpu_custom_call.1} parent=1 // pred_fallthru
      _
    // Predicated region
    $region6: #{tpu_custom_call.1} parent=1 // pred_check
      _
    $region7: #{tpu_custom_call.1} parent=1 // pred_check_branch
      %20 = sbr.rel (0) target = $region9
    $region8: #{tpu_custom_call.1} parent=1 // pred_region
      %22 = dma.done [#allocation3], 256
    $region9: #{tpu_custom_call.1} parent=1 // pred_fallthru
      _
    %v23 = vld [vmem:[#allocation2] sm:$0xff]
    %v24 = vld [vmem:[#allocation2 + $0x8] sm:$0xff]
    %v25 = vmax.f32 %v23, 0.0
    %v26 = vmax.f32 %v24, 0.0
    %27 = vst [vmem:[#allocation5] sm:$0xff] %v25
    %28 = vst [vmem:[#allocation5 + $0x8] sm:$0xff] %v26
    // Predicated region
    $region10: #{tpu_custom_call.1} parent=1 // pred_check
      _
    $region11: #{tpu_custom_call.1} parent=1 // pred_check_branch
      %30 = sbr.rel (0) target = $region13
    $region12: #{tpu_custom_call.1} parent=1 // pred_region
      %32 = vsyncadd [#allocation4], 0
      %s34 = sshll.u32 [#allocation5], 4
      %s35 = int_to_ptr.vmem [resolvable:$true] %s34
      %s36 = sshll.u32 %s1, 4
      %s37 = int_to_ptr.hbm [resolvable:$true] %s36
      %39 = dma.vmem_to_hbm [thread:$0]  %s35, 256, %s37, [#allocation4]
    $region13: #{tpu_custom_call.1} parent=1 // pred_fallthru
      _
    // Predicated region
    $region14: #{tpu_custom_call.1} parent=1 // pred_check
      _
    $region15: #{tpu_custom_call.1} parent=1 // pred_check_branch
      %41 = sbr.rel (0) target = $region17
    $region16: #{tpu_custom_call.1} parent=1 // pred_region
      %43 = dma.done [#allocation4], 256
    $region17: #{tpu_custom_call.1} parent=1 // pred_fallthru
      _
    %44 = vsyncpa [#allocation3], 1
    %45 = vsyncpa [#allocation4], 1

</llo_original>
